<compile_context>
chip_gen: v5e
topology: v5e:2x2
jax: 0.10.0
libtpu: 0.0.40
codegen_flags: <defaults>
</compile_context>

<pallas_src>
import jax
import jax.numpy as jnp
from jax.experimental import pallas as pl
from jax.experimental.pallas import tpu as pltpu


def _fused_deconv1x1_gelu_kernel(x_ref, w_ref, b_ref, o_ref):
    """Crop (padding=1 of a k=1/s=1 ConvTranspose2d) + 1x1 channel mix + bias
    + tanh-GELU, fully fused, NCHW in / NCHW out.

    x_ref: (N, Cin, H, W)     VMEM
    w_ref: (Cin, Cout)        SMEM (scalar weight reads)
    b_ref: (Cout,)            SMEM (scalar bias reads)
    o_ref: (N, Cout, H-2, W-2) VMEM
    """
    N, Cin, H, W = x_ref.shape
    Cout = o_ref.shape[1]

    x = x_ref[...]
    # padding=1 on a k=1/s=1 transposed conv == crop one pixel per side.
    xc = x[:, :, 1:H - 1, 1:W - 1].astype(jnp.float32)   # (N, Cin, Ho, Wo)

    # Folded tanh-GELU constants: tanh(c0*v + c1*v^3)
    c0 = 0.7978845608028654
    c1 = 0.044715 * 0.7978845608028654

    outs = []
    for co in range(Cout):                               # static unroll (Cout=6)
        # VPU FMA accumulation over Cin -- no MXU for a (12,4)@(4,6) problem.
        acc = xc[:, 0] * w_ref[0, co]
        for ci in range(1, Cin):                          # static unroll (Cin=4)
            acc = acc + xc[:, ci] * w_ref[ci, co]
        v = acc + b_ref[co]                               # (N, Ho, Wo)
        # 0.5 * v * (1 + tanh(c0*v + c1*v^3)), reusing v*v.
        inner = v * (c0 + c1 * (v * v))
        outs.append(0.5 * v * (1.0 + jnp.tanh(inner)))

    out = jnp.stack(outs, axis=1)                         # (N, Cout, Ho, Wo)
    o_ref[...] = out.astype(o_ref.dtype)


def model_forward(x1, w0, b0, w1, b1):
    # w1/b1 belong to the second ConvTranspose2d whose result (v2) is unused
    # in the PyTorch forward; the dead branch is intentionally not computed.
    del w1, b1
    N, Cin, H, W = x1.shape
    Cout = w0.shape[1]
    Ho, Wo = H - 2, W - 2
    assert Ho > 0 and Wo > 0, "ConvTranspose2d(k=1,s=1,padding=1) needs H,W > 2"

    # Tiny, one-time weight re-views (96 B / 24 B); everything hot is fused.
    w_mat = w0.reshape(Cin, Cout)      # PyTorch weight layout (Cin, Cout, 1, 1)
    b_vec = b0.reshape(Cout)

    return pl.pallas_call(
        _fused_deconv1x1_gelu_kernel,
        out_shape=jax.ShapeDtypeStruct((N, Cout, Ho, Wo), x1.dtype),
        in_specs=[
            pl.BlockSpec(memory_space=pltpu.MemorySpace.VMEM),   # x1, full block
            pl.BlockSpec(memory_space=pltpu.MemorySpace.SMEM),   # weights (scalars)
            pl.BlockSpec(memory_space=pltpu.MemorySpace.SMEM),   # bias (scalars)
        ],
        out_specs=pl.BlockSpec(memory_space=pltpu.MemorySpace.VMEM),
    )(x1, w_mat, b_vec)
    # TODO(synk): if this op is ever run at real batch sizes, re-tile with a
    # grid over M = N*Ho*Wo (>= 8*128 rows/block, lane-dense Cout) and
    # dimension_semantics=("parallel",) so both v7x TensorCores are used.


if __name__ == "__main__":
    key = jax.random.PRNGKey(0)
    kx, kw0, kb0, kw1, kb1 = jax.random.split(key, 5)

    # Input identical in shape/dtype to torch.randn(3, 4, 4, 4)
    x1 = jax.random.normal(kx, (3, 4, 4, 4), dtype=jnp.float32)

    # Deterministic parameter init (PyTorch-style uniform bounds).
    # ConvTranspose2d(4, 6, k=1): weight (Cin=4, Cout=6, 1, 1), bias (6,)
    bound0 = 1.0 / (4 * 1 * 1) ** 0.5
    w0 = jax.random.uniform(kw0, (4, 6, 1, 1), minval=-bound0, maxval=bound0,
                            dtype=jnp.float32)
    b0 = jax.random.uniform(kb0, (6,), minval=-bound0, maxval=bound0,
                            dtype=jnp.float32)
    # ConvTranspose2d(4, 8, k=2): weight (4, 8, 2, 2), bias (8,) -- unused branch.
    bound1 = 1.0 / (4 * 2 * 2) ** 0.5
    w1 = jax.random.uniform(kw1, (4, 8, 2, 2), minval=-bound1, maxval=bound1,
                            dtype=jnp.float32)
    b1 = jax.random.uniform(kb1, (8,), minval=-bound1, maxval=bound1,
                            dtype=jnp.float32)

    out = jax.jit(model_forward)(x1, w0, b0, w1, b1)
    jax.block_until_ready(out)
    assert out.shape == (3, 6, 2, 2), out.shape

    # Pure-JAX reference check (crop + 1x1 matmul + bias + tanh-GELU).
    xc = x1[:, :, 1:-1, 1:-1]
    v1 = jnp.einsum("ncij,cd->ndij", xc, w0.reshape(4, 6)) + b0.reshape(1, 6, 1, 1)
    ref = 0.5 * v1 * (1.0 + jnp.tanh(0.7978845608028654 * (v1 + 0.044715 * v1 ** 3)))
    assert jnp.allclose(out, ref, atol=1e-4, rtol=1e-4), \
        float(jnp.max(jnp.abs(out - ref)))

    print("KERNEL_OK")
</pallas_src>

<mosaic_0001>
module attributes {stable_mosaic.version = 11 : i64} {
  func.func @_fused_deconv1x1_gelu_kernel(%arg0: memref<3x4x4x4xf32, #tpu.memory_space<vmem>>, %arg1: memref<4x6xf32, #tpu.memory_space<smem>>, %arg2: memref<6xf32, #tpu.memory_space<smem>>, %arg3: memref<3x6x2x2xf32, #tpu.memory_space<vmem>>) attributes {dimension_semantics = [], scalar_prefetch = 0 : i64, scratch_operands = 0 : i64, tpu.core_type = #tpu.core_type<tc>} {
    %c0 = arith.constant 0 : index
    %c0_0 = arith.constant 0 : index
    %c0_1 = arith.constant 0 : index
    %c0_2 = arith.constant 0 : index
    %0 = vector.load %arg0[%c0, %c0_0, %c0_1, %c0_2] : memref<3x4x4x4xf32, #tpu.memory_space<vmem>>, vector<3x4x4x4xf32>
    %1 = vector.extract_strided_slice %0 {offsets = [0, 0, 1, 1], sizes = [3, 4, 2, 2], strides = [1, 1, 1, 1]} : vector<3x4x4x4xf32> to vector<3x4x2x2xf32>
    %2 = vector.extract_strided_slice %1 {offsets = [0, 0, 0, 0], sizes = [3, 1, 2, 2], strides = [1, 1, 1, 1]} : vector<3x4x2x2xf32> to vector<3x1x2x2xf32>
    %3 = vector.shape_cast %2 : vector<3x1x2x2xf32> to vector<3x2x2xf32>
    %c0_3 = arith.constant 0 : index
    %c0_4 = arith.constant 0 : index
    %4 = memref.load %arg1[%c0_3, %c0_4] : memref<4x6xf32, #tpu.memory_space<smem>>
    %5 = vector.broadcast %4 : f32 to vector<3x2x2xf32>
    %6 = arith.mulf %3, %5 : vector<3x2x2xf32>
    %7 = vector.extract_strided_slice %1 {offsets = [0, 1, 0, 0], sizes = [3, 1, 2, 2], strides = [1, 1, 1, 1]} : vector<3x4x2x2xf32> to vector<3x1x2x2xf32>
    %8 = vector.shape_cast %7 : vector<3x1x2x2xf32> to vector<3x2x2xf32>
    %c1 = arith.constant 1 : index
    %c0_5 = arith.constant 0 : index
    %9 = memref.load %arg1[%c1, %c0_5] : memref<4x6xf32, #tpu.memory_space<smem>>
    %10 = vector.broadcast %9 : f32 to vector<3x2x2xf32>
    %11 = arith.mulf %8, %10 : vector<3x2x2xf32>
    %12 = arith.addf %6, %11 : vector<3x2x2xf32>
    %13 = vector.extract_strided_slice %1 {offsets = [0, 2, 0, 0], sizes = [3, 1, 2, 2], strides = [1, 1, 1, 1]} : vector<3x4x2x2xf32> to vector<3x1x2x2xf32>
    %14 = vector.shape_cast %13 : vector<3x1x2x2xf32> to vector<3x2x2xf32>
    %c2 = arith.constant 2 : index
    %c0_6 = arith.constant 0 : index
    %15 = memref.load %arg1[%c2, %c0_6] : memref<4x6xf32, #tpu.memory_space<smem>>
    %16 = vector.broadcast %15 : f32 to vector<3x2x2xf32>
    %17 = arith.mulf %14, %16 : vector<3x2x2xf32>
    %18 = arith.addf %12, %17 : vector<3x2x2xf32>
    %19 = vector.extract_strided_slice %1 {offsets = [0, 3, 0, 0], sizes = [3, 1, 2, 2], strides = [1, 1, 1, 1]} : vector<3x4x2x2xf32> to vector<3x1x2x2xf32>
    %20 = vector.shape_cast %19 : vector<3x1x2x2xf32> to vector<3x2x2xf32>
    %c3 = arith.constant 3 : index
    %c0_7 = arith.constant 0 : index
    %21 = memref.load %arg1[%c3, %c0_7] : memref<4x6xf32, #tpu.memory_space<smem>>
    %22 = vector.broadcast %21 : f32 to vector<3x2x2xf32>
    %23 = arith.mulf %20, %22 : vector<3x2x2xf32>
    %24 = arith.addf %18, %23 : vector<3x2x2xf32>
    %c0_8 = arith.constant 0 : index
    %25 = memref.load %arg2[%c0_8] : memref<6xf32, #tpu.memory_space<smem>>
    %26 = vector.broadcast %25 : f32 to vector<3x2x2xf32>
    %27 = arith.addf %24, %26 : vector<3x2x2xf32>
    %28 = arith.mulf %27, %27 : vector<3x2x2xf32>
    %cst = arith.constant 0.0356774069 : f32
    %29 = vector.broadcast %cst : f32 to vector<3x2x2xf32>
    %30 = arith.mulf %29, %28 : vector<3x2x2xf32>
    %cst_9 = arith.constant 0.797884583 : f32
    %31 = vector.broadcast %cst_9 : f32 to vector<3x2x2xf32>
    %32 = arith.addf %31, %30 : vector<3x2x2xf32>
    %33 = arith.mulf %27, %32 : vector<3x2x2xf32>
    %cst_10 = arith.constant 5.000000e-01 : f32
    %34 = vector.broadcast %cst_10 : f32 to vector<3x2x2xf32>
    %35 = arith.mulf %34, %27 : vector<3x2x2xf32>
    %36 = math.tanh %33 : vector<3x2x2xf32>
    %cst_11 = arith.constant 1.000000e+00 : f32
    %37 = vector.broadcast %cst_11 : f32 to vector<3x2x2xf32>
    %38 = arith.addf %37, %36 : vector<3x2x2xf32>
    %39 = arith.mulf %35, %38 : vector<3x2x2xf32>
    %40 = vector.extract_strided_slice %1 {offsets = [0, 0, 0, 0], sizes = [3, 1, 2, 2], strides = [1, 1, 1, 1]} : vector<3x4x2x2xf32> to vector<3x1x2x2xf32>
    %41 = vector.shape_cast %40 : vector<3x1x2x2xf32> to vector<3x2x2xf32>
    %c0_12 = arith.constant 0 : index
    %c1_13 = arith.constant 1 : index
    %42 = memref.load %arg1[%c0_12, %c1_13] : memref<4x6xf32, #tpu.memory_space<smem>>
    %43 = vector.broadcast %42 : f32 to vector<3x2x2xf32>
    %44 = arith.mulf %41, %43 : vector<3x2x2xf32>
    %45 = vector.extract_strided_slice %1 {offsets = [0, 1, 0, 0], sizes = [3, 1, 2, 2], strides = [1, 1, 1, 1]} : vector<3x4x2x2xf32> to vector<3x1x2x2xf32>
    %46 = vector.shape_cast %45 : vector<3x1x2x2xf32> to vector<3x2x2xf32>
    %c1_14 = arith.constant 1 : index
    %c1_15 = arith.constant 1 : index
    %47 = memref.load %arg1[%c1_14, %c1_15] : memref<4x6xf32, #tpu.memory_space<smem>>
    %48 = vector.broadcast %47 : f32 to vector<3x2x2xf32>
    %49 = arith.mulf %46, %48 : vector<3x2x2xf32>
    %50 = arith.addf %44, %49 : vector<3x2x2xf32>
    %51 = vector.extract_strided_slice %1 {offsets = [0, 2, 0, 0], sizes = [3, 1, 2, 2], strides = [1, 1, 1, 1]} : vector<3x4x2x2xf32> to vector<3x1x2x2xf32>
    %52 = vector.shape_cast %51 : vector<3x1x2x2xf32> to vector<3x2x2xf32>
    %c2_16 = arith.constant 2 : index
    %c1_17 = arith.constant 1 : index
    %53 = memref.load %arg1[%c2_16, %c1_17] : memref<4x6xf32, #tpu.memory_space<smem>>
    %54 = vector.broadcast %53 : f32 to vector<3x2x2xf32>
    %55 = arith.mulf %52, %54 : vector<3x2x2xf32>
    %56 = arith.addf %50, %55 : vector<3x2x2xf32>
    %57 = vector.extract_strided_slice %1 {offsets = [0, 3, 0, 0], sizes = [3, 1, 2, 2], strides = [1, 1, 1, 1]} : vector<3x4x2x2xf32> to vector<3x1x2x2xf32>
    %58 = vector.shape_cast %57 : vector<3x1x2x2xf32> to vector<3x2x2xf32>
    %c3_18 = arith.constant 3 : index
    %c1_19 = arith.constant 1 : index
    %59 = memref.load %arg1[%c3_18, %c1_19] : memref<4x6xf32, #tpu.memory_space<smem>>
    %60 = vector.broadcast %59 : f32 to vector<3x2x2xf32>
    %61 = arith.mulf %58, %60 : vector<3x2x2xf32>
    %62 = arith.addf %56, %61 : vector<3x2x2xf32>
    %c1_20 = arith.constant 1 : index
    %63 = memref.load %arg2[%c1_20] : memref<6xf32, #tpu.memory_space<smem>>
    %64 = vector.broadcast %63 : f32 to vector<3x2x2xf32>
    %65 = arith.addf %62, %64 : vector<3x2x2xf32>
    %66 = arith.mulf %65, %65 : vector<3x2x2xf32>
    %cst_21 = arith.constant 0.0356774069 : f32
    %67 = vector.broadcast %cst_21 : f32 to vector<3x2x2xf32>
    %68 = arith.mulf %67, %66 : vector<3x2x2xf32>
    %cst_22 = arith.constant 0.797884583 : f32
    %69 = vector.broadcast %cst_22 : f32 to vector<3x2x2xf32>
    %70 = arith.addf %69, %68 : vector<3x2x2xf32>
    %71 = arith.mulf %65, %70 : vector<3x2x2xf32>
    %cst_23 = arith.constant 5.000000e-01 : f32
    %72 = vector.broadcast %cst_23 : f32 to vector<3x2x2xf32>
    %73 = arith.mulf %72, %65 : vector<3x2x2xf32>
    %74 = math.tanh %71 : vector<3x2x2xf32>
    %cst_24 = arith.constant 1.000000e+00 : f32
    %75 = vector.broadcast %cst_24 : f32 to vector<3x2x2xf32>
    %76 = arith.addf %75, %74 : vector<3x2x2xf32>
    %77 = arith.mulf %73, %76 : vector<3x2x2xf32>
    %78 = vector.extract_strided_slice %1 {offsets = [0, 0, 0, 0], sizes = [3, 1, 2, 2], strides = [1, 1, 1, 1]} : vector<3x4x2x2xf32> to vector<3x1x2x2xf32>
    %79 = vector.shape_cast %78 : vector<3x1x2x2xf32> to vector<3x2x2xf32>
    %c0_25 = arith.constant 0 : index
    %c2_26 = arith.constant 2 : index
    %80 = memref.load %arg1[%c0_25, %c2_26] : memref<4x6xf32, #tpu.memory_space<smem>>
    %81 = vector.broadcast %80 : f32 to vector<3x2x2xf32>
    %82 = arith.mulf %79, %81 : vector<3x2x2xf32>
    %83 = vector.extract_strided_slice %1 {offsets = [0, 1, 0, 0], sizes = [3, 1, 2, 2], strides = [1, 1, 1, 1]} : vector<3x4x2x2xf32> to vector<3x1x2x2xf32>
    %84 = vector.shape_cast %83 : vector<3x1x2x2xf32> to vector<3x2x2xf32>
    %c1_27 = arith.constant 1 : index
    %c2_28 = arith.constant 2 : index
    %85 = memref.load %arg1[%c1_27, %c2_28] : memref<4x6xf32, #tpu.memory_space<smem>>
    %86 = vector.broadcast %85 : f32 to vector<3x2x2xf32>
    %87 = arith.mulf %84, %86 : vector<3x2x2xf32>
    %88 = arith.addf %82, %87 : vector<3x2x2xf32>
    %89 = vector.extract_strided_slice %1 {offsets = [0, 2, 0, 0], sizes = [3, 1, 2, 2], strides = [1, 1, 1, 1]} : vector<3x4x2x2xf32> to vector<3x1x2x2xf32>
    %90 = vector.shape_cast %89 : vector<3x1x2x2xf32> to vector<3x2x2xf32>
    %c2_29 = arith.constant 2 : index
    %c2_30 = arith.constant 2 : index
    %91 = memref.load %arg1[%c2_29, %c2_30] : memref<4x6xf32, #tpu.memory_space<smem>>
    %92 = vector.broadcast %91 : f32 to vector<3x2x2xf32>
    %93 = arith.mulf %90, %92 : vector<3x2x2xf32>
    %94 = arith.addf %88, %93 : vector<3x2x2xf32>
    %95 = vector.extract_strided_slice %1 {offsets = [0, 3, 0, 0], sizes = [3, 1, 2, 2], strides = [1, 1, 1, 1]} : vector<3x4x2x2xf32> to vector<3x1x2x2xf32>
    %96 = vector.shape_cast %95 : vector<3x1x2x2xf32> to vector<3x2x2xf32>
    %c3_31 = arith.constant 3 : index
    %c2_32 = arith.constant 2 : index
    %97 = memref.load %arg1[%c3_31, %c2_32] : memref<4x6xf32, #tpu.memory_space<smem>>
    %98 = vector.broadcast %97 : f32 to vector<3x2x2xf32>
    %99 = arith.mulf %96, %98 : vector<3x2x2xf32>
    %100 = arith.addf %94, %99 : vector<3x2x2xf32>
    %c2_33 = arith.constant 2 : index
    %101 = memref.load %arg2[%c2_33] : memref<6xf32, #tpu.memory_space<smem>>
    %102 = vector.broadcast %101 : f32 to vector<3x2x2xf32>
    %103 = arith.addf %100, %102 : vector<3x2x2xf32>
    %104 = arith.mulf %103, %103 : vector<3x2x2xf32>
    %cst_34 = arith.constant 0.0356774069 : f32
    %105 = vector.broadcast %cst_34 : f32 to vector<3x2x2xf32>
    %106 = arith.mulf %105, %104 : vector<3x2x2xf32>
    %cst_35 = arith.constant 0.797884583 : f32
    %107 = vector.broadcast %cst_35 : f32 to vector<3x2x2xf32>
    %108 = arith.addf %107, %106 : vector<3x2x2xf32>
    %109 = arith.mulf %103, %108 : vector<3x2x2xf32>
    %cst_36 = arith.constant 5.000000e-01 : f32
    %110 = vector.broadcast %cst_36 : f32 to vector<3x2x2xf32>
    %111 = arith.mulf %110, %103 : vector<3x2x2xf32>
    %112 = math.tanh %109 : vector<3x2x2xf32>
    %cst_37 = arith.constant 1.000000e+00 : f32
    %113 = vector.broadcast %cst_37 : f32 to vector<3x2x2xf32>
    %114 = arith.addf %113, %112 : vector<3x2x2xf32>
    %115 = arith.mulf %111, %114 : vector<3x2x2xf32>
    %116 = vector.extract_strided_slice %1 {offsets = [0, 0, 0, 0], sizes = [3, 1, 2, 2], strides = [1, 1, 1, 1]} : vector<3x4x2x2xf32> to vector<3x1x2x2xf32>
    %117 = vector.shape_cast %116 : vector<3x1x2x2xf32> to vector<3x2x2xf32>
    %c0_38 = arith.constant 0 : index
    %c3_39 = arith.constant 3 : index
    %118 = memref.load %arg1[%c0_38, %c3_39] : memref<4x6xf32, #tpu.memory_space<smem>>
    %119 = vector.broadcast %118 : f32 to vector<3x2x2xf32>
    %120 = arith.mulf %117, %119 : vector<3x2x2xf32>
    %121 = vector.extract_strided_slice %1 {offsets = [0, 1, 0, 0], sizes = [3, 1, 2, 2], strides = [1, 1, 1, 1]} : vector<3x4x2x2xf32> to vector<3x1x2x2xf32>
    %122 = vector.shape_cast %121 : vector<3x1x2x2xf32> to vector<3x2x2xf32>
    %c1_40 = arith.constant 1 : index
    %c3_41 = arith.constant 3 : index
    %123 = memref.load %arg1[%c1_40, %c3_41] : memref<4x6xf32, #tpu.memory_space<smem>>
    %124 = vector.broadcast %123 : f32 to vector<3x2x2xf32>
    %125 = arith.mulf %122, %124 : vector<3x2x2xf32>
    %126 = arith.addf %120, %125 : vector<3x2x2xf32>
    %127 = vector.extract_strided_slice %1 {offsets = [0, 2, 0, 0], sizes = [3, 1, 2, 2], strides = [1, 1, 1, 1]} : vector<3x4x2x2xf32> to vector<3x1x2x2xf32>
    %128 = vector.shape_cast %127 : vector<3x1x2x2xf32> to vector<3x2x2xf32>
    %c2_42 = arith.constant 2 : index
    %c3_43 = arith.constant 3 : index
    %129 = memref.load %arg1[%c2_42, %c3_43] : memref<4x6xf32, #tpu.memory_space<smem>>
    %130 = vector.broadcast %129 : f32 to vector<3x2x2xf32>
    %131 = arith.mulf %128, %130 : vector<3x2x2xf32>
    %132 = arith.addf %126, %131 : vector<3x2x2xf32>
    %133 = vector.extract_strided_slice %1 {offsets = [0, 3, 0, 0], sizes = [3, 1, 2, 2], strides = [1, 1, 1, 1]} : vector<3x4x2x2xf32> to vector<3x1x2x2xf32>
    %134 = vector.shape_cast %133 : vector<3x1x2x2xf32> to vector<3x2x2xf32>
    %c3_44 = arith.constant 3 : index
    %c3_45 = arith.constant 3 : index
    %135 = memref.load %arg1[%c3_44, %c3_45] : memref<4x6xf32, #tpu.memory_space<smem>>
    %136 = vector.broadcast %135 : f32 to vector<3x2x2xf32>
    %137 = arith.mulf %134, %136 : vector<3x2x2xf32>
    %138 = arith.addf %132, %137 : vector<3x2x2xf32>
    %c3_46 = arith.constant 3 : index
    %139 = memref.load %arg2[%c3_46] : memref<6xf32, #tpu.memory_space<smem>>
    %140 = vector.broadcast %139 : f32 to vector<3x2x2xf32>
    %141 = arith.addf %138, %140 : vector<3x2x2xf32>
    %142 = arith.mulf %141, %141 : vector<3x2x2xf32>
    %cst_47 = arith.constant 0.0356774069 : f32
    %143 = vector.broadcast %cst_47 : f32 to vector<3x2x2xf32>
    %144 = arith.mulf %143, %142 : vector<3x2x2xf32>
    %cst_48 = arith.constant 0.797884583 : f32
    %145 = vector.broadcast %cst_48 : f32 to vector<3x2x2xf32>
    %146 = arith.addf %145, %144 : vector<3x2x2xf32>
    %147 = arith.mulf %141, %146 : vector<3x2x2xf32>
    %cst_49 = arith.constant 5.000000e-01 : f32
    %148 = vector.broadcast %cst_49 : f32 to vector<3x2x2xf32>
    %149 = arith.mulf %148, %141 : vector<3x2x2xf32>
    %150 = math.tanh %147 : vector<3x2x2xf32>
    %cst_50 = arith.constant 1.000000e+00 : f32
    %151 = vector.broadcast %cst_50 : f32 to vector<3x2x2xf32>
    %152 = arith.addf %151, %150 : vector<3x2x2xf32>
    %153 = arith.mulf %149, %152 : vector<3x2x2xf32>
    %154 = vector.extract_strided_slice %1 {offsets = [0, 0, 0, 0], sizes = [3, 1, 2, 2], strides = [1, 1, 1, 1]} : vector<3x4x2x2xf32> to vector<3x1x2x2xf32>
    %155 = vector.shape_cast %154 : vector<3x1x2x2xf32> to vector<3x2x2xf32>
    %c0_51 = arith.constant 0 : index
    %c4 = arith.constant 4 : index
    %156 = memref.load %arg1[%c0_51, %c4] : memref<4x6xf32, #tpu.memory_space<smem>>
    %157 = vector.broadcast %156 : f32 to vector<3x2x2xf32>
    %158 = arith.mulf %155, %157 : vector<3x2x2xf32>
    %159 = vector.extract_strided_slice %1 {offsets = [0, 1, 0, 0], sizes = [3, 1, 2, 2], strides = [1, 1, 1, 1]} : vector<3x4x2x2xf32> to vector<3x1x2x2xf32>
    %160 = vector.shape_cast %159 : vector<3x1x2x2xf32> to vector<3x2x2xf32>
    %c1_52 = arith.constant 1 : index
    %c4_53 = arith.constant 4 : index
    %161 = memref.load %arg1[%c1_52, %c4_53] : memref<4x6xf32, #tpu.memory_space<smem>>
    %162 = vector.broadcast %161 : f32 to vector<3x2x2xf32>
    %163 = arith.mulf %160, %162 : vector<3x2x2xf32>
    %164 = arith.addf %158, %163 : vector<3x2x2xf32>
    %165 = vector.extract_strided_slice %1 {offsets = [0, 2, 0, 0], sizes = [3, 1, 2, 2], strides = [1, 1, 1, 1]} : vector<3x4x2x2xf32> to vector<3x1x2x2xf32>
    %166 = vector.shape_cast %165 : vector<3x1x2x2xf32> to vector<3x2x2xf32>
    %c2_54 = arith.constant 2 : index
    %c4_55 = arith.constant 4 : index
    %167 = memref.load %arg1[%c2_54, %c4_55] : memref<4x6xf32, #tpu.memory_space<smem>>
    %168 = vector.broadcast %167 : f32 to vector<3x2x2xf32>
    %169 = arith.mulf %166, %168 : vector<3x2x2xf32>
    %170 = arith.addf %164, %169 : vector<3x2x2xf32>
    %171 = vector.extract_strided_slice %1 {offsets = [0, 3, 0, 0], sizes = [3, 1, 2, 2], strides = [1, 1, 1, 1]} : vector<3x4x2x2xf32> to vector<3x1x2x2xf32>
    %172 = vector.shape_cast %171 : vector<3x1x2x2xf32> to vector<3x2x2xf32>
    %c3_56 = arith.constant 3 : index
    %c4_57 = arith.constant 4 : index
    %173 = memref.load %arg1[%c3_56, %c4_57] : memref<4x6xf32, #tpu.memory_space<smem>>
    %174 = vector.broadcast %173 : f32 to vector<3x2x2xf32>
    %175 = arith.mulf %172, %174 : vector<3x2x2xf32>
    %176 = arith.addf %170, %175 : vector<3x2x2xf32>
    %c4_58 = arith.constant 4 : index
    %177 = memref.load %arg2[%c4_58] : memref<6xf32, #tpu.memory_space<smem>>
    %178 = vector.broadcast %177 : f32 to vector<3x2x2xf32>
    %179 = arith.addf %176, %178 : vector<3x2x2xf32>
    %180 = arith.mulf %179, %179 : vector<3x2x2xf32>
    %cst_59 = arith.constant 0.0356774069 : f32
    %181 = vector.broadcast %cst_59 : f32 to vector<3x2x2xf32>
    %182 = arith.mulf %181, %180 : vector<3x2x2xf32>
    %cst_60 = arith.constant 0.797884583 : f32
    %183 = vector.broadcast %cst_60 : f32 to vector<3x2x2xf32>
    %184 = arith.addf %183, %182 : vector<3x2x2xf32>
    %185 = arith.mulf %179, %184 : vector<3x2x2xf32>
    %cst_61 = arith.constant 5.000000e-01 : f32
    %186 = vector.broadcast %cst_61 : f32 to vector<3x2x2xf32>
    %187 = arith.mulf %186, %179 : vector<3x2x2xf32>
    %188 = math.tanh %185 : vector<3x2x2xf32>
    %cst_62 = arith.constant 1.000000e+00 : f32
    %189 = vector.broadcast %cst_62 : f32 to vector<3x2x2xf32>
    %190 = arith.addf %189, %188 : vector<3x2x2xf32>
    %191 = arith.mulf %187, %190 : vector<3x2x2xf32>
    %192 = vector.extract_strided_slice %1 {offsets = [0, 0, 0, 0], sizes = [3, 1, 2, 2], strides = [1, 1, 1, 1]} : vector<3x4x2x2xf32> to vector<3x1x2x2xf32>
    %193 = vector.shape_cast %192 : vector<3x1x2x2xf32> to vector<3x2x2xf32>
    %c0_63 = arith.constant 0 : index
    %c5 = arith.constant 5 : index
    %194 = memref.load %arg1[%c0_63, %c5] : memref<4x6xf32, #tpu.memory_space<smem>>
    %195 = vector.broadcast %194 : f32 to vector<3x2x2xf32>
    %196 = arith.mulf %193, %195 : vector<3x2x2xf32>
    %197 = vector.extract_strided_slice %1 {offsets = [0, 1, 0, 0], sizes = [3, 1, 2, 2], strides = [1, 1, 1, 1]} : vector<3x4x2x2xf32> to vector<3x1x2x2xf32>
    %198 = vector.shape_cast %197 : vector<3x1x2x2xf32> to vector<3x2x2xf32>
    %c1_64 = arith.constant 1 : index
    %c5_65 = arith.constant 5 : index
    %199 = memref.load %arg1[%c1_64, %c5_65] : memref<4x6xf32, #tpu.memory_space<smem>>
    %200 = vector.broadcast %199 : f32 to vector<3x2x2xf32>
    %201 = arith.mulf %198, %200 : vector<3x2x2xf32>
    %202 = arith.addf %196, %201 : vector<3x2x2xf32>
    %203 = vector.extract_strided_slice %1 {offsets = [0, 2, 0, 0], sizes = [3, 1, 2, 2], strides = [1, 1, 1, 1]} : vector<3x4x2x2xf32> to vector<3x1x2x2xf32>
    %204 = vector.shape_cast %203 : vector<3x1x2x2xf32> to vector<3x2x2xf32>
    %c2_66 = arith.constant 2 : index
    %c5_67 = arith.constant 5 : index
    %205 = memref.load %arg1[%c2_66, %c5_67] : memref<4x6xf32, #tpu.memory_space<smem>>
    %206 = vector.broadcast %205 : f32 to vector<3x2x2xf32>
    %207 = arith.mulf %204, %206 : vector<3x2x2xf32>
    %208 = arith.addf %202, %207 : vector<3x2x2xf32>
    %209 = vector.extract_strided_slice %1 {offsets = [0, 3, 0, 0], sizes = [3, 1, 2, 2], strides = [1, 1, 1, 1]} : vector<3x4x2x2xf32> to vector<3x1x2x2xf32>
    %210 = vector.shape_cast %209 : vector<3x1x2x2xf32> to vector<3x2x2xf32>
    %c3_68 = arith.constant 3 : index
    %c5_69 = arith.constant 5 : index
    %211 = memref.load %arg1[%c3_68, %c5_69] : memref<4x6xf32, #tpu.memory_space<smem>>
    %212 = vector.broadcast %211 : f32 to vector<3x2x2xf32>
    %213 = arith.mulf %210, %212 : vector<3x2x2xf32>
    %214 = arith.addf %208, %213 : vector<3x2x2xf32>
    %c5_70 = arith.constant 5 : index
    %215 = memref.load %arg2[%c5_70] : memref<6xf32, #tpu.memory_space<smem>>
    %216 = vector.broadcast %215 : f32 to vector<3x2x2xf32>
    %217 = arith.addf %214, %216 : vector<3x2x2xf32>
    %218 = arith.mulf %217, %217 : vector<3x2x2xf32>
    %cst_71 = arith.constant 0.0356774069 : f32
    %219 = vector.broadcast %cst_71 : f32 to vector<3x2x2xf32>
    %220 = arith.mulf %219, %218 : vector<3x2x2xf32>
    %cst_72 = arith.constant 0.797884583 : f32
    %221 = vector.broadcast %cst_72 : f32 to vector<3x2x2xf32>
    %222 = arith.addf %221, %220 : vector<3x2x2xf32>
    %223 = arith.mulf %217, %222 : vector<3x2x2xf32>
    %cst_73 = arith.constant 5.000000e-01 : f32
    %224 = vector.broadcast %cst_73 : f32 to vector<3x2x2xf32>
    %225 = arith.mulf %224, %217 : vector<3x2x2xf32>
    %226 = math.tanh %223 : vector<3x2x2xf32>
    %cst_74 = arith.constant 1.000000e+00 : f32
    %227 = vector.broadcast %cst_74 : f32 to vector<3x2x2xf32>
    %228 = arith.addf %227, %226 : vector<3x2x2xf32>
    %229 = arith.mulf %225, %228 : vector<3x2x2xf32>
    %230 = vector.shape_cast %39 : vector<3x2x2xf32> to vector<3x1x2x2xf32>
    %231 = vector.shape_cast %77 : vector<3x2x2xf32> to vector<3x1x2x2xf32>
    %232 = vector.shape_cast %115 : vector<3x2x2xf32> to vector<3x1x2x2xf32>
    %233 = vector.shape_cast %153 : vector<3x2x2xf32> to vector<3x1x2x2xf32>
    %234 = vector.shape_cast %191 : vector<3x2x2xf32> to vector<3x1x2x2xf32>
    %235 = vector.shape_cast %229 : vector<3x2x2xf32> to vector<3x1x2x2xf32>
    %236 = tpu.concatenate %230, %231, %232, %233, %234, %235 in 1 : vector<3x1x2x2xf32>, vector<3x1x2x2xf32>, vector<3x1x2x2xf32>, vector<3x1x2x2xf32>, vector<3x1x2x2xf32>, vector<3x1x2x2xf32> -> vector<3x6x2x2xf32>
    %c0_75 = arith.constant 0 : index
    %c0_76 = arith.constant 0 : index
    %c0_77 = arith.constant 0 : index
    %c0_78 = arith.constant 0 : index
    %237 = vector.load %arg3[%c0_75, %c0_76, %c0_77, %c0_78] : memref<3x6x2x2xf32, #tpu.memory_space<vmem>>, vector<3x6x2x2xf32>
    tpu.vector_store %arg3[%c0_75, %c0_76, %c0_77, %c0_78], %236 {strides = array<i32>} : memref<3x6x2x2xf32, #tpu.memory_space<vmem>>, vector<3x6x2x2xf32>,
    return
  }
}

</mosaic_0001>

<llo_original>
// kernel: model_forward.1
$region0: #{model_forward.1}
  #allocation0 [shape = 'u32[]', space=smem, size = 0x4, offset = 0x4, fixed_abs, tag = 'smem constant byte address 0x4 - core index']
  #allocation1 [shape = 'u32[72,128]{1,0:T(1,128)}', space=vmem, size = 0x9000, scoped, tag = 'internal scratch']
  %s0 = inlined_call_operand.hbm [shape: f32[3,4,4,4], index: 0, kind: input, shape index: {}]
  %s1 = inlined_call_operand.hbm [shape: f32[4,6], index: 1, kind: input, shape index: {}]
  %s2 = inlined_call_operand.vmem [shape: f32[6], index: 2, kind: input, shape index: {}]
  %s3 = inlined_call_operand.vmem [shape: f32[3,6,2,2], index: 3, kind: output, shape index: {}]
  %s4 = sld [smem:[#allocation0]]
  $region34: #{model_forward.1} parent=0
    _
  %s6 = ssub.s32 1, %s4
  %s7 = scalar_select 0, %s6, %s4
  $region1: #{model_forward.1} parent=0
    #allocation2 [shape = 'u8[24576]{0}', space=vmem, size = 0x6000, scoped, tag = 'input window, operand 0, single buffered']
    #allocation3 [shape = 's32[1]{0}', space=sflag, size = 0x4, scoped, tag = 'scoped memory for model_forward.1']
    #allocation4 [shape = 's32[1]{0}', space=sflag, size = 0x4, scoped, tag = 'scoped memory for model_forward.1']
    #allocation5 [shape = 's32[1]{0}', space=sflag, size = 0x4, scoped, tag = 'scoped memory for model_forward.1']
    #allocation6 [shape = 'u8[2048]{0}', space=smem, size = 0x800, scoped, tag = 'input window, operand 1, single buffered']
    #allocation7 [shape = 'u8[512]{0}', space=smem, size = 0x200, scoped, tag = 'input window, operand 2, single buffered']
    %8 = vsyncpa [#allocation3], 0
    %9 = vsyncpa [#allocation4], 0
    %10 = vsyncpa [#allocation5], 0
    // Predicated region
    $region2: #{model_forward.1} parent=1 // pred_check
      _
    $region3: #{model_forward.1} parent=1 // pred_check_branch
      %12 = sbr.rel (0) target = $region5
    $region4: #{model_forward.1} parent=1 // pred_region
      %14 = vsyncadd [#allocation3], 0
      %s15 = sshll.u32 %s0, 4
      %s16 = int_to_ptr.hbm [resolvable:$true] %s15
      %s17 = sshll.u32 [#allocation2], 4
      %s18 = int_to_ptr.vmem [resolvable:$true] %s17
      %23 = dma.hbm_to_vmem [thread:$0]  %s16, 768, %s18, [#allocation3], 64, 64, 4
    $region5: #{model_forward.1} parent=1 // pred_fallthru
      _
    // Predicated region
    $region6: #{model_forward.1} parent=1 // pred_check
      _
    $region7: #{model_forward.1} parent=1 // pred_check_branch
      %25 = sbr.rel (0) target = $region9
    $region8: #{model_forward.1} parent=1 // pred_region
      %27 = vsyncadd [#allocation4], 0
      %s29 = sshll.u32 %s1, 4
      %s30 = int_to_ptr.hbm [resolvable:$true] %s29
      %32 = dma.hbm_to_smem %s30, 64, [#allocation6], [#allocation4]
    $region9: #{model_forward.1} parent=1 // pred_fallthru
      _
    // Predicated region
    $region10: #{model_forward.1} parent=1 // pred_check
      _
    $region11: #{model_forward.1} parent=1 // pred_check_branch
      %34 = sbr.rel (0) target = $region13
    $region12: #{model_forward.1} parent=1 // pred_region
      %36 = vsyncadd [#allocation5], 0
      %s38 = sshll.u32 %s2, 4
      %s39 = int_to_ptr.vmem [resolvable:$true] %s38
      %41 = dma.vmem_to_smem %s39, 16, [#allocation7], [#allocation5]
    $region13: #{model_forward.1} parent=1 // pred_fallthru
      _
    // Predicated region
    $region14: #{model_forward.1} parent=1 // pred_check
      _
    $region15: #{model_forward.1} parent=1 // pred_check_branch
      %43 = sbr.rel (0) target = $region17
    $region16: #{model_forward.1} parent=1 // pred_region
      %45 = dma.done [#allocation3], 768
    $region17: #{model_forward.1} parent=1 // pred_fallthru
      _
    // Predicated region
    $region18: #{model_forward.1} parent=1 // pred_check
      _
    $region19: #{model_forward.1} parent=1 // pred_check_branch
      %47 = sbr.rel (0) target = $region21
    $region20: #{model_forward.1} parent=1 // pred_region
      %49 = dma.done [#allocation4], 64
    $region21: #{model_forward.1} parent=1 // pred_fallthru
      _
    // Predicated region
    $region22: #{model_forward.1} parent=1 // pred_check
      _
    $region23: #{model_forward.1} parent=1 // pred_check_branch
      %51 = sbr.rel (0) target = $region25
    $region24: #{model_forward.1} parent=1 // pred_region
      %53 = dma.done [#allocation5], 16
    $region25: #{model_forward.1} parent=1 // pred_fallthru
      _
    %54 = sfence
    %v55 = vld [vmem:[#allocation2] sm:$0xf]
    %v56 = vld [vmem:[#allocation2 + $0x4] sm:$0xf]
    %v57 = vld [vmem:[#allocation2 + $0x8] sm:$0xf]
    %v58 = vld [vmem:[#allocation2 + $0xc] sm:$0xf]
    %v59 = vld [vmem:[#allocation2 + $0x10] sm:$0xf]
    %v60 = vld [vmem:[#allocation2 + $0x14] sm:$0xf]
    %v61 = vld [vmem:[#allocation2 + $0x18] sm:$0xf]
    %v62 = vld [vmem:[#allocation2 + $0x1c] sm:$0xf]
    %v63 = vld [vmem:[#allocation2 + $0x20] sm:$0xf]
    %v64 = vld [vmem:[#allocation2 + $0x24] sm:$0xf]
    %v65 = vld [vmem:[#allocation2 + $0x28] sm:$0xf]
    %v66 = vld [vmem:[#allocation2 + $0x2c] sm:$0xf]
    %s67 = sld [smem:[#allocation6]]
    %v68 = vstv %s67
    %v69 = vmul.f32 %v55, %v68
    %v70 = vmul.f32 %v59, %v68
    %v71 = vmul.f32 %v63, %v68
    %s72 = sld [smem:[#allocation6 + $0x80]]
    %v73 = vstv %s72
    %v74 = vmul.f32 %v56, %v73
    %v75 = vmul.f32 %v60, %v73
    %v76 = vmul.f32 %v64, %v73
    %v77 = vadd.f32 %v69, %v74
    %v78 = vadd.f32 %v70, %v75
    %v79 = vadd.f32 %v71, %v76
    %s80 = sld [smem:[#allocation6 + $0x100]]
    %v81 = vstv %s80
    %v82 = vmul.f32 %v57, %v81
    %v83 = vmul.f32 %v61, %v81
    %v84 = vmul.f32 %v65, %v81
    %v85 = vadd.f32 %v77, %v82
    %v86 = vadd.f32 %v78, %v83
    %v87 = vadd.f32 %v79, %v84
    %s88 = sld [smem:[#allocation6 + $0x180]]
    %v89 = vstv %s88
    %v90 = vmul.f32 %v58, %v89
    %v91 = vmul.f32 %v62, %v89
    %v92 = vmul.f32 %v66, %v89
    %v93 = vadd.f32 %v85, %v90
    %v94 = vadd.f32 %v86, %v91
    %v95 = vadd.f32 %v87, %v92
    %s96 = sld [smem:[#allocation7]]
    %v97 = vstv %s96
    %v98 = vadd.f32 %v93, %v97
    %v99 = vadd.f32 %v94, %v97
    %v100 = vadd.f32 %v95, %v97
    %v101 = vmul.f32 %v98, %v98
    %v102 = vmul.f32 %v99, %v99
    %v103 = vmul.f32 %v100, %v100
    %v104 = vmul.f32 %v101, 0.035677407
    %v105 = vmul.f32 %v102, 0.035677407
    %v106 = vmul.f32 %v103, 0.035677407
    %v107 = vadd.f32 %v104, 0.7978846
    %v108 = vadd.f32 %v105, 0.7978846
    %v109 = vadd.f32 %v106, 0.7978846
    %v110 = vmul.f32 %v98, %v107
    %v111 = vmul.f32 %v99, %v108
    %v112 = vmul.f32 %v100, %v109
    %v113 = vmul.f32 %v98, 0.5
    %v114 = vmul.f32 %v99, 0.5
    %v115 = vmul.f32 %v100, 0.5
    %v116 = vtanh.pop %v110
    %v117 = vtanh.pop %v111
    %v118 = vtanh.pop %v112
    %v119 = vadd.f32 %v116, 1.0
    %v120 = vadd.f32 %v117, 1.0
    %v121 = vadd.f32 %v118, 1.0
    %v122 = vmul.f32 %v113, %v119
    %v123 = vmul.f32 %v114, %v120
    %v124 = vmul.f32 %v115, %v121
    %s125 = sld [smem:[#allocation6 + $0x1]]
    %v126 = vstv %s125
    %v127 = vmul.f32 %v55, %v126
    %v128 = vmul.f32 %v59, %v126
    %v129 = vmul.f32 %v63, %v126
    %s130 = sld [smem:[#allocation6 + $0x81]]
    %v131 = vstv %s130
    %v132 = vmul.f32 %v56, %v131
    %v133 = vmul.f32 %v60, %v131
    %v134 = vmul.f32 %v64, %v131
    %v135 = vadd.f32 %v127, %v132
    %v136 = vadd.f32 %v128, %v133
    %v137 = vadd.f32 %v129, %v134
    %s138 = sld [smem:[#allocation6 + $0x101]]
    %v139 = vstv %s138
    %v140 = vmul.f32 %v57, %v139
    %v141 = vmul.f32 %v61, %v139
    %v142 = vmul.f32 %v65, %v139
    %v143 = vadd.f32 %v135, %v140
    %v144 = vadd.f32 %v136, %v141
    %v145 = vadd.f32 %v137, %v142
    %s146 = sld [smem:[#allocation6 + $0x181]]
    %v147 = vstv %s146
    %v148 = vmul.f32 %v58, %v147
    %v149 = vmul.f32 %v62, %v147
    %v150 = vmul.f32 %v66, %v147
    %v151 = vadd.f32 %v143, %v148
    %v152 = vadd.f32 %v144, %v149
    %v153 = vadd.f32 %v145, %v150
    %s154 = sld [smem:[#allocation7 + $0x1]]
    %v155 = vstv %s154
    %v156 = vadd.f32 %v151, %v155
    %v157 = vadd.f32 %v152, %v155
    %v158 = vadd.f32 %v153, %v155
    %v159 = vmul.f32 %v156, %v156
    %v160 = vmul.f32 %v157, %v157
    %v161 = vmul.f32 %v158, %v158
    %v162 = vmul.f32 %v159, 0.035677407
    %v163 = vmul.f32 %v160, 0.035677407
    %v164 = vmul.f32 %v161, 0.035677407
    %v165 = vadd.f32 %v162, 0.7978846
    %v166 = vadd.f32 %v163, 0.7978846
    %v167 = vadd.f32 %v164, 0.7978846
    %v168 = vmul.f32 %v156, %v165
    %v169 = vmul.f32 %v157, %v166
    %v170 = vmul.f32 %v158, %v167
    %v171 = vmul.f32 %v156, 0.5
    %v172 = vmul.f32 %v157, 0.5
    %v173 = vmul.f32 %v158, 0.5
    %v174 = vtanh.pop %v168
    %v175 = vtanh.pop %v169
    %v176 = vtanh.pop %v170
    %v177 = vadd.f32 %v174, 1.0
    %v178 = vadd.f32 %v175, 1.0
    %v179 = vadd.f32 %v176, 1.0
    %v180 = vmul.f32 %v171, %v177
    %v181 = vmul.f32 %v172, %v178
    %v182 = vmul.f32 %v173, %v179
    %s183 = sld [smem:[#allocation6 + $0x2]]
    %v184 = vstv %s183
    %v185 = vmul.f32 %v55, %v184
    %v186 = vmul.f32 %v59, %v184
    %v187 = vmul.f32 %v63, %v184
    %s188 = sld [smem:[#allocation6 + $0x82]]
    %v189 = vstv %s188
    %v190 = vmul.f32 %v56, %v189
    %v191 = vmul.f32 %v60, %v189
    %v192 = vmul.f32 %v64, %v189
    %v193 = vadd.f32 %v185, %v190
    %v194 = vadd.f32 %v186, %v191
    %v195 = vadd.f32 %v187, %v192
    %s196 = sld [smem:[#allocation6 + $0x102]]
    %v197 = vstv %s196
    %v198 = vmul.f32 %v57, %v197
    %v199 = vmul.f32 %v61, %v197
    %v200 = vmul.f32 %v65, %v197
    %v201 = vadd.f32 %v193, %v198
    %v202 = vadd.f32 %v194, %v199
    %v203 = vadd.f32 %v195, %v200
    %s204 = sld [smem:[#allocation6 + $0x182]]
    %v205 = vstv %s204
    %v206 = vmul.f32 %v58, %v205
    %v207 = vmul.f32 %v62, %v205
    %v208 = vmul.f32 %v66, %v205
    %v209 = vadd.f32 %v201, %v206
    %v210 = vadd.f32 %v202, %v207
    %v211 = vadd.f32 %v203, %v208
    %s212 = sld [smem:[#allocation7 + $0x2]]
    %v213 = vstv %s212
    %v214 = vadd.f32 %v209, %v213
    %v215 = vadd.f32 %v210, %v213
    %v216 = vadd.f32 %v211, %v213
    %v217 = vmul.f32 %v214, %v214
    %v218 = vmul.f32 %v215, %v215
    %v219 = vmul.f32 %v216, %v216
    %v220 = vmul.f32 %v217, 0.035677407
    %v221 = vmul.f32 %v218, 0.035677407
    %v222 = vmul.f32 %v219, 0.035677407
    %v223 = vadd.f32 %v220, 0.7978846
    %v224 = vadd.f32 %v221, 0.7978846
    %v225 = vadd.f32 %v222, 0.7978846
    %v226 = vmul.f32 %v214, %v223
    %v227 = vmul.f32 %v215, %v224
    %v228 = vmul.f32 %v216, %v225
    %v229 = vmul.f32 %v214, 0.5
    %v230 = vmul.f32 %v215, 0.5
    %v231 = vmul.f32 %v216, 0.5
    %v232 = vtanh.pop %v226
    %v233 = vtanh.pop %v227
    %v234 = vtanh.pop %v228
    %v235 = vadd.f32 %v232, 1.0
    %v236 = vadd.f32 %v233, 1.0
    %v237 = vadd.f32 %v234, 1.0
    %v238 = vmul.f32 %v229, %v235
    %v239 = vmul.f32 %v230, %v236
    %v240 = vmul.f32 %v231, %v237
    %s241 = sld [smem:[#allocation6 + $0x3]]
    %v242 = vstv %s241
    %v243 = vmul.f32 %v55, %v242
    %v244 = vmul.f32 %v59, %v242
    %v245 = vmul.f32 %v63, %v242
    %s246 = sld [smem:[#allocation6 + $0x83]]
    %v247 = vstv %s246
    %v248 = vmul.f32 %v56, %v247
    %v249 = vmul.f32 %v60, %v247
    %v250 = vmul.f32 %v64, %v247
    %v251 = vadd.f32 %v243, %v248
    %v252 = vadd.f32 %v244, %v249
    %v253 = vadd.f32 %v245, %v250
    %s254 = sld [smem:[#allocation6 + $0x103]]
    %v255 = vstv %s254
    %v256 = vmul.f32 %v57, %v255
    %v257 = vmul.f32 %v61, %v255
    %v258 = vmul.f32 %v65, %v255
    %v259 = vadd.f32 %v251, %v256
    %v260 = vadd.f32 %v252, %v257
    %v261 = vadd.f32 %v253, %v258
    %s262 = sld [smem:[#allocation6 + $0x183]]
    %v263 = vstv %s262
    %v264 = vmul.f32 %v58, %v263
    %v265 = vmul.f32 %v62, %v263
    %v266 = vmul.f32 %v66, %v263
    %v267 = vadd.f32 %v259, %v264
    %v268 = vadd.f32 %v260, %v265
    %v269 = vadd.f32 %v261, %v266
    %s270 = sld [smem:[#allocation7 + $0x3]]
    %v271 = vstv %s270
    %v272 = vadd.f32 %v267, %v271
    %v273 = vadd.f32 %v268, %v271
    %v274 = vadd.f32 %v269, %v271
    %v275 = vmul.f32 %v272, %v272
    %v276 = vmul.f32 %v273, %v273
    %v277 = vmul.f32 %v274, %v274
    %v278 = vmul.f32 %v275, 0.035677407
    %v279 = vmul.f32 %v276, 0.035677407
    %v280 = vmul.f32 %v277, 0.035677407
    %v281 = vadd.f32 %v278, 0.7978846
    %v282 = vadd.f32 %v279, 0.7978846
    %v283 = vadd.f32 %v280, 0.7978846
    %v284 = vmul.f32 %v272, %v281
    %v285 = vmul.f32 %v273, %v282
    %v286 = vmul.f32 %v274, %v283
    %v287 = vmul.f32 %v272, 0.5
    %v288 = vmul.f32 %v273, 0.5
    %v289 = vmul.f32 %v274, 0.5
    %v290 = vtanh.pop %v284
    %v291 = vtanh.pop %v285
    %v292 = vtanh.pop %v286
    %v293 = vadd.f32 %v290, 1.0
    %v294 = vadd.f32 %v291, 1.0
    %v295 = vadd.f32 %v292, 1.0
    %v296 = vmul.f32 %v287, %v293
    %v297 = vmul.f32 %v288, %v294
    %v298 = vmul.f32 %v289, %v295
    %s299 = sld [smem:[#allocation6 + $0x4]]
    %v300 = vstv %s299
    %v301 = vmul.f32 %v55, %v300
    %v302 = vmul.f32 %v59, %v300
    %v303 = vmul.f32 %v63, %v300
    %s304 = sld [smem:[#allocation6 + $0x84]]
    %v305 = vstv %s304
    %v306 = vmul.f32 %v56, %v305
    %v307 = vmul.f32 %v60, %v305
    %v308 = vmul.f32 %v64, %v305
    %v309 = vadd.f32 %v301, %v306
    %v310 = vadd.f32 %v302, %v307
    %v311 = vadd.f32 %v303, %v308
    %s312 = sld [smem:[#allocation6 + $0x104]]
    %v313 = vstv %s312
    %v314 = vmul.f32 %v57, %v313
    %v315 = vmul.f32 %v61, %v313
    %v316 = vmul.f32 %v65, %v313
    %v317 = vadd.f32 %v309, %v314
    %v318 = vadd.f32 %v310, %v315
    %v319 = vadd.f32 %v311, %v316
    %s320 = sld [smem:[#allocation6 + $0x184]]
    %v321 = vstv %s320
    %v322 = vmul.f32 %v58, %v321
    %v323 = vmul.f32 %v62, %v321
    %v324 = vmul.f32 %v66, %v321
    %v325 = vadd.f32 %v317, %v322
    %v326 = vadd.f32 %v318, %v323
    %v327 = vadd.f32 %v319, %v324
    %s328 = sld [smem:[#allocation7 + $0x4]]
    %v329 = vstv %s328
    %v330 = vadd.f32 %v325, %v329
    %v331 = vadd.f32 %v326, %v329
    %v332 = vadd.f32 %v327, %v329
    %v333 = vmul.f32 %v330, %v330
    %v334 = vmul.f32 %v331, %v331
    %v335 = vmul.f32 %v332, %v332
    %v336 = vmul.f32 %v333, 0.035677407
    %v337 = vmul.f32 %v334, 0.035677407
    %v338 = vmul.f32 %v335, 0.035677407
    %v339 = vadd.f32 %v336, 0.7978846
    %v340 = vadd.f32 %v337, 0.7978846
    %v341 = vadd.f32 %v338, 0.7978846
    %v342 = vmul.f32 %v330, %v339
    %v343 = vmul.f32 %v331, %v340
    %v344 = vmul.f32 %v332, %v341
    %v345 = vmul.f32 %v330, 0.5
    %v346 = vmul.f32 %v331, 0.5
    %v347 = vmul.f32 %v332, 0.5
    %v348 = vtanh.pop %v342
    %v349 = vtanh.pop %v343
    %v350 = vtanh.pop %v344
    %v351 = vadd.f32 %v348, 1.0
    %v352 = vadd.f32 %v349, 1.0
    %v353 = vadd.f32 %v350, 1.0
    %v354 = vmul.f32 %v345, %v351
    %v355 = vmul.f32 %v346, %v352
    %v356 = vmul.f32 %v347, %v353
    %s357 = sld [smem:[#allocation6 + $0x5]]
    %v358 = vstv %s357
    %v359 = vmul.f32 %v55, %v358
    %v360 = vmul.f32 %v59, %v358
    %v361 = vmul.f32 %v63, %v358
    %s362 = sld [smem:[#allocation6 + $0x85]]
    %v363 = vstv %s362
    %v364 = vmul.f32 %v56, %v363
    %v365 = vmul.f32 %v60, %v363
    %v366 = vmul.f32 %v64, %v363
    %v367 = vadd.f32 %v359, %v364
    %v368 = vadd.f32 %v360, %v365
    %v369 = vadd.f32 %v361, %v366
    %s370 = sld [smem:[#allocation6 + $0x105]]
    %v371 = vstv %s370
    %v372 = vmul.f32 %v57, %v371
    %v373 = vmul.f32 %v61, %v371
    %v374 = vmul.f32 %v65, %v371
    %v375 = vadd.f32 %v367, %v372
    %v376 = vadd.f32 %v368, %v373
    %v377 = vadd.f32 %v369, %v374
    %s378 = sld [smem:[#allocation6 + $0x185]]
    %v379 = vstv %s378
    %v380 = vmul.f32 %v58, %v379
    %v381 = vmul.f32 %v62, %v379
    %v382 = vmul.f32 %v66, %v379
    %v383 = vadd.f32 %v375, %v380
    %v384 = vadd.f32 %v376, %v381
    %v385 = vadd.f32 %v377, %v382
    %s386 = sld [smem:[#allocation7 + $0x5]]
    %v387 = vstv %s386
    %v388 = vadd.f32 %v383, %v387
    %v389 = vadd.f32 %v384, %v387
    %v390 = vadd.f32 %v385, %v387
    %v391 = vmul.f32 %v388, %v388
    %v392 = vmul.f32 %v389, %v389
    %v393 = vmul.f32 %v390, %v390
    %v394 = vmul.f32 %v391, 0.035677407
    %v395 = vmul.f32 %v392, 0.035677407
    %v396 = vmul.f32 %v393, 0.035677407
    %v397 = vadd.f32 %v394, 0.7978846
    %v398 = vadd.f32 %v395, 0.7978846
    %v399 = vadd.f32 %v396, 0.7978846
    %v400 = vmul.f32 %v388, %v397
    %v401 = vmul.f32 %v389, %v398
    %v402 = vmul.f32 %v390, %v399
    %v403 = vmul.f32 %v388, 0.5
    %v404 = vmul.f32 %v389, 0.5
    %v405 = vmul.f32 %v390, 0.5
    %v406 = vtanh.pop %v400
    %v407 = vtanh.pop %v401
    %v408 = vtanh.pop %v402
    %v409 = vadd.f32 %v406, 1.0
    %v410 = vadd.f32 %v407, 1.0
    %v411 = vadd.f32 %v408, 1.0
    %v412 = vmul.f32 %v403, %v409
    %v413 = vmul.f32 %v404, %v410
    %v414 = vmul.f32 %v405, %v411
    %433 = vrot.lane.b32.xlu0 %v122, 127
    %v434 = vpop.permute.xlu0 %433
    %435 = vrot.lane.b32.xlu0 %v180, 127
    %v436 = vpop.permute.xlu0 %435
    %437 = vrot.lane.b32.xlu0 %v238, 127
    %v438 = vpop.permute.xlu0 %437
    %439 = vrot.lane.b32.xlu0 %v296, 127
    %v440 = vpop.permute.xlu0 %439
    %441 = vrot.lane.b32.xlu0 %v354, 127
    %v442 = vpop.permute.xlu0 %441
    %443 = vrot.lane.b32.xlu0 %v412, 127
    %v444 = vpop.permute.xlu0 %443
    %445 = vrot.lane.b32.xlu0 %v123, 127
    %v446 = vpop.permute.xlu0 %445
    %447 = vrot.lane.b32.xlu0 %v181, 127
    %v448 = vpop.permute.xlu0 %447
    %449 = vrot.lane.b32.xlu0 %v239, 127
    %v450 = vpop.permute.xlu0 %449
    %451 = vrot.lane.b32.xlu0 %v297, 127
    %v452 = vpop.permute.xlu0 %451
    %453 = vrot.lane.b32.xlu0 %v355, 127
    %v454 = vpop.permute.xlu0 %453
    %455 = vrot.lane.b32.xlu0 %v413, 127
    %v456 = vpop.permute.xlu0 %455
    %457 = vrot.lane.b32.xlu0 %v124, 127
    %v458 = vpop.permute.xlu0 %457
    %459 = vrot.lane.b32.xlu0 %v182, 127
    %v460 = vpop.permute.xlu0 %459
    %461 = vrot.lane.b32.xlu0 %v240, 127
    %v462 = vpop.permute.xlu0 %461
    %463 = vrot.lane.b32.xlu0 %v298, 127
    %v464 = vpop.permute.xlu0 %463
    %465 = vrot.lane.b32.xlu0 %v356, 127
    %v466 = vpop.permute.xlu0 %465
    %467 = vrot.lane.b32.xlu0 %v414, 127
    %v468 = vpop.permute.xlu0 %467
    %vm487 = vcmask 10241
    %488 = vst.msk [vmem:[%s3 - $0x1] sm:$0x6] %vm487, %v434
    %489 = vst.msk [vmem:[%s3 + $0x1] sm:$0x6] %vm487, %v436
    %490 = vst.msk [vmem:[%s3 + $0x3] sm:$0x6] %vm487, %v438
    %491 = vst.msk [vmem:[%s3 + $0x5] sm:$0x6] %vm487, %v440
    %492 = vst.msk [vmem:[%s3 + $0x7] sm:$0x6] %vm487, %v442
    %493 = vst.msk [vmem:[%s3 + $0x9] sm:$0x6] %vm487, %v444
    %494 = vst.msk [vmem:[%s3 + $0xb] sm:$0x6] %vm487, %v446
    %495 = vst.msk [vmem:[%s3 + $0xd] sm:$0x6] %vm487, %v448
    %496 = vst.msk [vmem:[%s3 + $0xf] sm:$0x6] %vm487, %v450
    %497 = vst.msk [vmem:[%s3 + $0x11] sm:$0x6] %vm487, %v452
    %498 = vst.msk [vmem:[%s3 + $0x13] sm:$0x6] %vm487, %v454
    %499 = vst.msk [vmem:[%s3 + $0x15] sm:$0x6] %vm487, %v456
    %500 = vst.msk [vmem:[%s3 + $0x17] sm:$0x6] %vm487, %v458
    %501 = vst.msk [vmem:[%s3 + $0x19] sm:$0x6] %vm487, %v460
    %502 = vst.msk [vmem:[%s3 + $0x1b] sm:$0x6] %vm487, %v462
    %503 = vst.msk [vmem:[%s3 + $0x1d] sm:$0x6] %vm487, %v464
    %504 = vst.msk [vmem:[%s3 + $0x1f] sm:$0x6] %vm487, %v466
    %505 = vst.msk [vmem:[%s3 + $0x21] sm:$0x6] %vm487, %v468
    // Predicated region
    $region26: #{model_forward.1} parent=1 // pred_check
      _
    $region27: #{model_forward.1} parent=1 // pred_check_branch
      %507 = sbr.rel (0) target = $region29
    $region28: #{model_forward.1} parent=1 // pred_region
      _
    $region29: #{model_forward.1} parent=1 // pred_fallthru
      _
    // Predicated region
    $region30: #{model_forward.1} parent=1 // pred_check
      _
    $region31: #{model_forward.1} parent=1 // pred_check_branch
      %509 = sbr.rel (0) target = $region33
    $region32: #{model_forward.1} parent=1 // pred_region
      _
    $region33: #{model_forward.1} parent=1 // pred_fallthru
      _
    %510 = vsyncpa [#allocation3], 1
    %511 = vsyncpa [#allocation4], 1
    %512 = vsyncpa [#allocation5], 1

</llo_original>
